<compile_context>
chip_gen: v5e
topology: v5e:2x2
jax: 0.10.0
libtpu: 0.0.40
codegen_flags: <defaults>
</compile_context>

<pallas_src>
import math

import jax
import jax.numpy as jnp
from jax.experimental import pallas as pl
from jax.experimental.pallas import tpu as pltpu


def _make_attn_kernel(scale):
    def _attn_kernel(q_ref, k_ref, v_ref, o_ref, a_ref):
        """One grid step: G (batch*head) pairs x TQ query rows vs full key axis.

        q_ref : (G, TQ, D)  compute dtype (bf16 or f32)
        k_ref : (G, S,  D)  compute dtype
        v_ref : (G, S,  D)  compute dtype
        o_ref : (G, TQ, D)  float32
        a_ref : (G, TQ, S)  attention probabilities (f32 or bf16)
        """
        q = q_ref[...]
        k = k_ref[...]
        v = v_ref[...]

        # scores: contract head_dim directly (no explicit k.T -> XLU stays
        # free).  MXU matmul with f32 accumulation; 1/sqrt(D) applied to the
        # f32 scores in-kernel (free VPU filler in a memory-bound kernel).
        s = jnp.einsum("gqd,gkd->gqk", q, k,
                       preferred_element_type=jnp.float32) * scale

        # numerically-stable softmax over the key axis, all in f32.
        m = jnp.max(s, axis=-1, keepdims=True)
        p = jnp.exp(s - m)
        l = jnp.sum(p, axis=-1, keepdims=True)
        # Kept exact (not approx=True) so returned weights match f32 softmax.
        probs = p * pl.reciprocal(l, approx=False)

        # Store attn immediately (frees the f32 tile; output may be bf16).
        a_ref[...] = probs.astype(a_ref.dtype)

        # out = probs @ V  (single compute-dtype copy feeds the MXU).
        o = jnp.einsum("gqk,gkd->gqd", probs.astype(v.dtype), v,
                       preferred_element_type=jnp.float32)
        o_ref[...] = o.astype(o_ref.dtype)

    return _attn_kernel


def _physical_vmem_bytes():
    """Per-core physical VMEM, with a conservative fallback (v7x-sized)."""
    try:
        info = pltpu.get_tpu_info()
        for name in ("vmem_capacity_bytes", "vmem_bytes", "vmem_size_bytes"):
            v = getattr(info, name, None)
            if v:
                return int(v)
    except Exception:
        pass
    return 64 * 1024 * 1024


def _choose_tiles(BH, S, D, compute_itemsize, attn_itemsize, budget_bytes):
    """Pick (G, TQ): #(batch,head) pairs per step and query-tile length.

    TQ is sized first (it drives per-matmul M and the lane-dense attn store
    block); G is a batch dimension of the einsum and only amortizes the
    ~0.35 us per-grid-step overhead, so it is grown second.
    """

    def footprint(g, tq):
        # double-buffered input blocks
        qkv = 2 * (g * tq * D + 2 * g * S * D) * compute_itemsize
        # double-buffered output blocks (out f32, attn in attn_dtype)
        outs = 2 * (g * tq * D * 4 + g * tq * S * attn_itemsize)
        # live in-kernel intermediates after tightening: ~2 f32 (G,TQ,S)
        # tiles (scores + exp/probs), one compute-dtype probs copy, f32 out.
        inter = 2 * g * tq * S * 4 + g * tq * S * compute_itemsize + g * tq * D * 4
        return qkv + outs + inter

    tq_cands = [S] + [t for t in (2048, 1024, 512, 256, 128, 64, 32, 16, 8)
                      if t < S and S % t == 0]
    g_cands = [g for g in range(BH, 0, -1) if BH % g == 0]
    for tq in tq_cands:
        for g in g_cands:
            if footprint(g, tq) <= budget_bytes:
                return g, tq
    # TODO(synk): for very long S (>=16-32K, esp. on v7x's 64 MiB VMEM) add a
    # key-tiled / flash-style two-pass path; this fallback can still overflow.
    return 1, tq_cands[-1]


def cuda_attention_forward(query, key, value, mask=None,
                           compute_dtype=jnp.bfloat16,
                           attn_dtype=jnp.float32):
    """query/key/value: (B, H, S, D).  Returns (out, attn).

    out  : (B, H, S, D) float32
    attn : (B, H, S, S) softmax attention weights (rows = query positions),
           emitted in `attn_dtype` (f32 default for parity with the CUDA
           reference; bf16 halves the dominant HBM writeback traffic).
    """
    # TODO(synk): `mask` is accepted but unused — the reference CUDA extension
    # is never handed the mask either (it is forwarded and silently ignored).
    del mask

    B, H, S, D = query.shape
    BH = B * H
    scale = 1.0 / math.sqrt(D)

    # Cast MXU operands to the compute dtype (bf16 default: MXU-native and
    # halves Q/K/V DMA bytes).  No wrapper-side pre-scaling: the 1/sqrt(D)
    # multiply happens in-kernel on the f32 scores.
    q = query.reshape(BH, S, D).astype(compute_dtype)
    k = key.reshape(BH, S, D).astype(compute_dtype)
    v = value.reshape(BH, S, D).astype(compute_dtype)

    compute_itemsize = jnp.dtype(compute_dtype).itemsize
    attn_itemsize = jnp.dtype(attn_dtype).itemsize

    # Generation-aware VMEM sizing: ~5/8 of physical VMEM as the working
    # budget (80 MiB on v5e/v6e's 128 MiB, 40 MiB on v7x's 64 MiB per TC),
    # and raise the compiler's scoped-VMEM limit to match (with headroom).
    phys_vmem = _physical_vmem_bytes()
    budget_bytes = (phys_vmem * 5) // 8
    vmem_limit_bytes = min(phys_vmem - (8 << 20), budget_bytes + (16 << 20))

    G, TQ = _choose_tiles(BH, S, D, compute_itemsize, attn_itemsize,
                          budget_bytes)
    grid = (BH // G, S // TQ)

    q_spec = pl.BlockSpec((G, TQ, D), lambda i, j: (i, j, 0))
    kv_spec = pl.BlockSpec((G, S, D), lambda i, j: (i, 0, 0))
    o_spec = pl.BlockSpec((G, TQ, D), lambda i, j: (i, j, 0))
    # For S >= 128 the attn last dim is naturally lane-dense; below that the
    # stores are masked (tiny shapes only).
    a_spec = pl.BlockSpec((G, TQ, S), lambda i, j: (i, j, 0))

    cost = pl.CostEstimate(
        flops=4 * BH * S * S * D,                 # QK^T + PV
        transcendentals=BH * S * S,               # exp per attn element
        bytes_accessed=(3 * BH * S * D * compute_itemsize
                        + BH * S * D * 4
                        + BH * S * S * attn_itemsize),
    )

    out, attn = pl.pallas_call(
        _make_attn_kernel(scale),
        out_shape=(
            jax.ShapeDtypeStruct((BH, S, D), jnp.float32),
            jax.ShapeDtypeStruct((BH, S, S), attn_dtype),
        ),
        grid_spec=pltpu.PrefetchScalarGridSpec(
            num_scalar_prefetch=0,
            grid=grid,
            in_specs=[q_spec, kv_spec, kv_spec],
            out_specs=[o_spec, a_spec],
        ),
        compiler_params=pltpu.CompilerParams(
            # BH axis megacore-sharded; query-tile axis sequential per core so
            # the K/V block (index map constant in j) is reused, not re-DMA'd.
            dimension_semantics=("parallel", "arbitrary"),
            vmem_limit_bytes=vmem_limit_bytes,
        ),
        cost_estimate=cost,
    )(q, k, v)

    return out.reshape(B, H, S, D), attn.reshape(B, H, S, S)


def _reference_f32(query, key, value):
    scale = 1.0 / math.sqrt(query.shape[-1])
    s = jnp.einsum("bhqd,bhkd->bhqk", query, key) * scale
    p = jax.nn.softmax(s, axis=-1)
    o = jnp.einsum("bhqk,bhkd->bhqd", p, value)
    return o, p


def _reference_mirrored(query, key, value, compute_dtype):
    """Mirrors the kernel's cast points (tolerance check for the bf16 path)."""
    scale = 1.0 / math.sqrt(query.shape[-1])
    qb = query.astype(compute_dtype)
    kb = key.astype(compute_dtype)
    vb = value.astype(compute_dtype)
    s = jnp.einsum("bhqd,bhkd->bhqk", qb, kb,
                   preferred_element_type=jnp.float32) * scale
    m = jnp.max(s, axis=-1, keepdims=True)
    p = jnp.exp(s - m)
    l = jnp.sum(p, axis=-1, keepdims=True)
    probs = p / l
    o = jnp.einsum("bhqk,bhkd->bhqd", probs.astype(compute_dtype), vb,
                   preferred_element_type=jnp.float32)
    return o, probs


if __name__ == "__main__":
    # config: batch_size=2, num_head=4, max_seq_len=8, head_dim=32
    B, H, S, D = 2, 4, 8, 32
    key0 = jax.random.PRNGKey(0)
    kq, kk, kv = jax.random.split(key0, 3)
    query = jax.random.normal(kq, (B, H, S, D), dtype=jnp.float32)
    key_t = jax.random.normal(kk, (B, H, S, D), dtype=jnp.float32)
    value = jax.random.normal(kv, (B, H, S, D), dtype=jnp.float32)
    mask = jnp.ones((B, H, S, S), dtype=jnp.float32)  # unused (API parity)

    # 1) f32 compute path: bit-faithful to the f32 CUDA forward semantics.
    out32, attn32 = cuda_attention_forward(query, key_t, value, mask,
                                           compute_dtype=jnp.float32)
    jax.block_until_ready((out32, attn32))
    ref_out, ref_attn = _reference_f32(query, key_t, value)
    assert jnp.allclose(out32, ref_out, atol=1e-5, rtol=1e-5)
    assert jnp.allclose(attn32, ref_attn, atol=1e-5, rtol=1e-5)

    # 2) default fast path: bf16 MXU operands, f32 softmax / accumulation,
    #    attn returned in f32 (module parity).
    out_bf, attn_bf = cuda_attention_forward(query, key_t, value, mask)
    jax.block_until_ready((out_bf, attn_bf))
    mref_out, mref_attn = _reference_mirrored(query, key_t, value, jnp.bfloat16)
    assert jnp.allclose(out_bf, mref_out, atol=5e-3, rtol=5e-3)
    assert jnp.allclose(attn_bf, mref_attn, atol=5e-3, rtol=5e-3)

    # 3) writeback-reduced path: attn emitted in bf16 (halves dominant bytes).
    out_a16, attn_a16 = cuda_attention_forward(query, key_t, value, mask,
                                               attn_dtype=jnp.bfloat16)
    jax.block_until_ready((out_a16, attn_a16))
    assert jnp.allclose(out_a16, mref_out, atol=5e-3, rtol=5e-3)
    assert jnp.allclose(attn_a16.astype(jnp.float32), mref_attn,
                        atol=2e-2, rtol=2e-2)

    print("KERNEL_OK")
</pallas_src>

<mosaic_0001>
module attributes {stable_mosaic.version = 11 : i64} {
  func.func @_attn_kernel(%arg0: i32, %arg1: i32, %arg2: memref<8x8x32xf32, #tpu.memory_space<vmem>>, %arg3: memref<8x8x32xf32, #tpu.memory_space<vmem>>, %arg4: memref<8x8x32xf32, #tpu.memory_space<vmem>>, %arg5: memref<8x8x32xf32, #tpu.memory_space<vmem>>, %arg6: memref<8x8x8xf32, #tpu.memory_space<vmem>>) attributes {dimension_semantics = [#tpu.dimension_semantics<parallel>, #tpu.dimension_semantics<arbitrary>], iteration_bounds = array<i64: 1, 1>, scalar_prefetch = 0 : i64, scratch_operands = 0 : i64, tpu.core_type = #tpu.core_type<tc>, window_params = [{transform_indices = @transform_0, window_bounds = array<i64: 8, 8, 32>}, {transform_indices = @transform_1, window_bounds = array<i64: 8, 8, 32>}, {transform_indices = @transform_2, window_bounds = array<i64: 8, 8, 32>}, {transform_indices = @transform_3, window_bounds = array<i64: 8, 8, 32>}, {transform_indices = @transform_4, window_bounds = array<i64: 8, 8, 8>}]} {
    %c0 = arith.constant 0 : index
    %c0_0 = arith.constant 0 : index
    %c0_1 = arith.constant 0 : index
    %0 = vector.load %arg2[%c0, %c0_0, %c0_1] : memref<8x8x32xf32, #tpu.memory_space<vmem>>, vector<8x8x32xf32>
    %c0_2 = arith.constant 0 : index
    %c0_3 = arith.constant 0 : index
    %c0_4 = arith.constant 0 : index
    %1 = vector.load %arg3[%c0_2, %c0_3, %c0_4] : memref<8x8x32xf32, #tpu.memory_space<vmem>>, vector<8x8x32xf32>
    %c0_5 = arith.constant 0 : index
    %c0_6 = arith.constant 0 : index
    %c0_7 = arith.constant 0 : index
    %2 = vector.load %arg4[%c0_5, %c0_6, %c0_7] : memref<8x8x32xf32, #tpu.memory_space<vmem>>, vector<8x8x32xf32>
    "tpu.trace_start"() <{level = 10 : i32, message = "gqd,gkd->gqk"}> : () -> ()
    %cst = arith.constant dense<0.000000e+00> : vector<8x8x8xf32>
    %3 = tpu.matmul %0, %1, %cst {dimension_numbers = #tpu.dot_dimension_numbers<[2], [2], [1], [1], [0, 0, 0, 1, 1, 1], [0], [0]>} : vector<8x8x32xf32>, vector<8x8x32xf32>, vector<8x8x8xf32> -> vector<8x8x8xf32>
    "tpu.trace_stop"() : () -> ()
    %cst_8 = arith.constant 0.176776692 : f32
    %4 = vector.broadcast %cst_8 : f32 to vector<8x8x8xf32>
    %5 = arith.mulf %3, %4 : vector<8x8x8xf32>
    %cst_9 = arith.constant dense<0xFF800000> : vector<8x8xf32>
    %6 = vector.multi_reduction <maximumf>, %5, %cst_9 [2] : vector<8x8x8xf32> to vector<8x8xf32>
    %7 = vector.shape_cast %6 : vector<8x8xf32> to vector<8x8x1xf32>
    %8 = vector.broadcast %7 : vector<8x8x1xf32> to vector<8x8x8xf32>
    %9 = arith.subf %5, %8 : vector<8x8x8xf32>
    %10 = math.exp %9 : vector<8x8x8xf32>
    %cst_10 = arith.constant dense<0.000000e+00> : vector<8x8xf32>
    %11 = vector.multi_reduction <add>, %10, %cst_10 [2] : vector<8x8x8xf32> to vector<8x8xf32>
    %12 = vector.shape_cast %11 : vector<8x8xf32> to vector<8x8x1xf32>
    %13 = tpu.reciprocal %12 : vector<8x8x1xf32> -> vector<8x8x1xf32>
    %14 = vector.broadcast %13 : vector<8x8x1xf32> to vector<8x8x8xf32>
    %15 = arith.mulf %10, %14 : vector<8x8x8xf32>
    %c0_11 = arith.constant 0 : index
    %c0_12 = arith.constant 0 : index
    %c0_13 = arith.constant 0 : index
    %16 = vector.load %arg6[%c0_11, %c0_12, %c0_13] : memref<8x8x8xf32, #tpu.memory_space<vmem>>, vector<8x8x8xf32>
    tpu.vector_store %arg6[%c0_11, %c0_12, %c0_13], %15 {strides = array<i32>} : memref<8x8x8xf32, #tpu.memory_space<vmem>>, vector<8x8x8xf32>,
    "tpu.trace_start"() <{level = 10 : i32, message = "gqk,gkd->gqd"}> : () -> ()
    %cst_14 = arith.constant dense<0.000000e+00> : vector<8x8x32xf32>
    %17 = tpu.matmul %15, %2, %cst_14 {dimension_numbers = #tpu.dot_dimension_numbers<[2], [1], [1], [2], [0, 0, 0, 1, 1, 2], [0], [0]>} : vector<8x8x8xf32>, vector<8x8x32xf32>, vector<8x8x32xf32> -> vector<8x8x32xf32>
    "tpu.trace_stop"() : () -> ()
    %c0_15 = arith.constant 0 : index
    %c0_16 = arith.constant 0 : index
    %c0_17 = arith.constant 0 : index
    %18 = vector.load %arg5[%c0_15, %c0_16, %c0_17] : memref<8x8x32xf32, #tpu.memory_space<vmem>>, vector<8x8x32xf32>
    tpu.vector_store %arg5[%c0_15, %c0_16, %c0_17], %17 {strides = array<i32>} : memref<8x8x32xf32, #tpu.memory_space<vmem>>, vector<8x8x32xf32>,
    return
  }
  func.func @transform_0(%arg0: i32, %arg1: i32) -> (i32, i32, i32) {
    %c0_i32 = arith.constant 0 : i32
    %c0_i32_0 = arith.constant 0 : i32
    return %arg0, %arg1, %c0_i32 : i32, i32, i32
  }
  func.func @transform_1(%arg0: i32, %arg1: i32) -> (i32, i32, i32) {
    %c0_i32 = arith.constant 0 : i32
    %c0_i32_0 = arith.constant 0 : i32
    %c0_i32_1 = arith.constant 0 : i32
    return %arg0, %c0_i32, %c0_i32_0 : i32, i32, i32
  }
  func.func @transform_2(%arg0: i32, %arg1: i32) -> (i32, i32, i32) {
    %c0_i32 = arith.constant 0 : i32
    %c0_i32_0 = arith.constant 0 : i32
    %c0_i32_1 = arith.constant 0 : i32
    return %arg0, %c0_i32, %c0_i32_0 : i32, i32, i32
  }
  func.func @transform_3(%arg0: i32, %arg1: i32) -> (i32, i32, i32) {
    %c0_i32 = arith.constant 0 : i32
    %c0_i32_0 = arith.constant 0 : i32
    return %arg0, %arg1, %c0_i32 : i32, i32, i32
  }
  func.func @transform_4(%arg0: i32, %arg1: i32) -> (i32, i32, i32) {
    %c0_i32 = arith.constant 0 : i32
    %c0_i32_0 = arith.constant 0 : i32
    return %arg0, %arg1, %c0_i32 : i32, i32, i32
  }
}

</mosaic_0001>

<llo_original>
// kernel: tpu_custom_call.1
$region0: #{tpu_custom_call.1}
  #allocation0 [shape = 'u32[]', space=smem, size = 0x4, offset = 0x4, fixed_abs, tag = 'smem constant byte address 0x4 - core index']
  #allocation1 [shape = 'u32[72,128]{1,0:T(1,128)}', space=vmem, size = 0x9000, scoped, tag = 'internal scratch']
  %s0 = inlined_call_operand.hbm [shape: f32[8,8,32], index: 0, kind: input, shape index: {}]
  %s1 = inlined_call_operand.hbm [shape: f32[8,8,32], index: 1, kind: input, shape index: {}]
  %s2 = inlined_call_operand.hbm [shape: f32[8,8,32], index: 2, kind: input, shape index: {}]
  %s3 = inlined_call_operand.hbm [shape: f32[8,8,32], index: 3, kind: output, shape index: {0}]
  %s4 = inlined_call_operand.hbm [shape: f32[8,8,8], index: 4, kind: output, shape index: {1}]
  %5 = xla_tuple %s3, %s4
  %s6 = sld [smem:[#allocation0]]
  $region42: #{tpu_custom_call.1} parent=0
    _
  %s8 = ssub.s32 1, %s6
  %s9 = scalar_select 0, %s8, %s6
  $region1: #{tpu_custom_call.1} parent=0
    #allocation2 [shape = 'u8[32768]{0}', space=vmem, size = 0x8000, scoped, tag = 'input window, operand 0, single buffered']
    #allocation3 [shape = 's32[1]{0}', space=sflag, size = 0x4, scoped, tag = 'scoped memory for tpu_custom_call.1']
    #allocation4 [shape = 's32[1]{0}', space=sflag, size = 0x4, scoped, tag = 'scoped memory for tpu_custom_call.1']
    #allocation5 [shape = 'u8[32768]{0}', space=vmem, size = 0x8000, scoped, tag = 'input window, operand 1, single buffered']
    #allocation6 [shape = 's32[1]{0}', space=sflag, size = 0x4, scoped, tag = 'scoped memory for tpu_custom_call.1']
    #allocation7 [shape = 'u8[32768]{0}', space=vmem, size = 0x8000, scoped, tag = 'input window, operand 2, single buffered']
    #allocation8 [shape = 'u8[32768]{0}', space=vmem, size = 0x8000, scoped, tag = 'output window, operand 0, single buffered']
    #allocation9 [shape = 'u8[32768]{0}', space=vmem, size = 0x8000, scoped, tag = 'output window, operand 1, single buffered']
    #allocation10 [shape = 's32[1]{0}', space=sflag, size = 0x4, scoped, tag = 'scoped memory for tpu_custom_call.1']
    %10 = vsyncpa [#allocation3], 0
    %11 = vsyncpa [#allocation6], 0
    %12 = vsyncpa [#allocation4], 0
    %13 = vsyncpa [#allocation10], 0
    // Predicated region
    $region2: #{tpu_custom_call.1} parent=1 // pred_check
      _
    $region3: #{tpu_custom_call.1} parent=1 // pred_check_branch
      %15 = sbr.rel (0) target = $region5
    $region4: #{tpu_custom_call.1} parent=1 // pred_region
      %17 = vsyncadd [#allocation3], 0
      %s18 = sshll.u32 %s0, 4
      %s19 = int_to_ptr.hbm [resolvable:$true] %s18
      %s20 = sshll.u32 [#allocation2], 4
      %s21 = int_to_ptr.vmem [resolvable:$true] %s20
      %26 = dma.hbm_to_vmem [thread:$0]  %s19, 1024, %s21, [#allocation3], 128, 128, 8
    $region5: #{tpu_custom_call.1} parent=1 // pred_fallthru
      _
    // Predicated region
    $region6: #{tpu_custom_call.1} parent=1 // pred_check
      _
    $region7: #{tpu_custom_call.1} parent=1 // pred_check_branch
      %28 = sbr.rel (0) target = $region9
    $region8: #{tpu_custom_call.1} parent=1 // pred_region
      %30 = vsyncadd [#allocation6], 0
      %s31 = sshll.u32 %s1, 4
      %s32 = int_to_ptr.hbm [resolvable:$true] %s31
      %s33 = sshll.u32 [#allocation5], 4
      %s34 = int_to_ptr.vmem [resolvable:$true] %s33
      %39 = dma.hbm_to_vmem [thread:$0]  %s32, 1024, %s34, [#allocation6], 128, 128, 8
    $region9: #{tpu_custom_call.1} parent=1 // pred_fallthru
      _
    // Predicated region
    $region10: #{tpu_custom_call.1} parent=1 // pred_check
      _
    $region11: #{tpu_custom_call.1} parent=1 // pred_check_branch
      %41 = sbr.rel (0) target = $region13
    $region12: #{tpu_custom_call.1} parent=1 // pred_region
      %43 = vsyncadd [#allocation6], 0
      %s44 = sshll.u32 %s2, 4
      %s45 = int_to_ptr.hbm [resolvable:$true] %s44
      %s46 = sshll.u32 [#allocation7], 4
      %s47 = int_to_ptr.vmem [resolvable:$true] %s46
      %52 = dma.hbm_to_vmem [thread:$0]  %s45, 1024, %s47, [#allocation6], 128, 128, 8
    $region13: #{tpu_custom_call.1} parent=1 // pred_fallthru
      _
    // Predicated region
    $region14: #{tpu_custom_call.1} parent=1 // pred_check
      _
    $region15: #{tpu_custom_call.1} parent=1 // pred_check_branch
      %54 = sbr.rel (0) target = $region17
    $region16: #{tpu_custom_call.1} parent=1 // pred_region
      %56 = dma.done [#allocation3], 1024
    $region17: #{tpu_custom_call.1} parent=1 // pred_fallthru
      _
    // Predicated region
    $region18: #{tpu_custom_call.1} parent=1 // pred_check
      _
    $region19: #{tpu_custom_call.1} parent=1 // pred_check_branch
      %58 = sbr.rel (0) target = $region21
    $region20: #{tpu_custom_call.1} parent=1 // pred_region
      %60 = dma.done [#allocation6], 1024
    $region21: #{tpu_custom_call.1} parent=1 // pred_fallthru
      _
    // Predicated region
    $region22: #{tpu_custom_call.1} parent=1 // pred_check
      _
    $region23: #{tpu_custom_call.1} parent=1 // pred_check_branch
      %62 = sbr.rel (0) target = $region25
    $region24: #{tpu_custom_call.1} parent=1 // pred_region
      %64 = dma.done [#allocation6], 1024
    $region25: #{tpu_custom_call.1} parent=1 // pred_fallthru
      _
    %v65 = vld [vmem:[#allocation2] sm:$0xff]
    %v66 = vld [vmem:[#allocation2 + $0x8] sm:$0xff]
    %v67 = vld [vmem:[#allocation2 + $0x10] sm:$0xff]
    %v68 = vld [vmem:[#allocation2 + $0x18] sm:$0xff]
    %v69 = vld [vmem:[#allocation2 + $0x20] sm:$0xff]
    %v70 = vld [vmem:[#allocation2 + $0x28] sm:$0xff]
    %v71 = vld [vmem:[#allocation2 + $0x30] sm:$0xff]
    %v72 = vld [vmem:[#allocation2 + $0x38] sm:$0xff]
    %v73 = vld [vmem:[#allocation5] sm:$0xff]
    %v74 = vld [vmem:[#allocation5 + $0x8] sm:$0xff]
    %v75 = vld [vmem:[#allocation5 + $0x10] sm:$0xff]
    %v76 = vld [vmem:[#allocation5 + $0x18] sm:$0xff]
    %v77 = vld [vmem:[#allocation5 + $0x20] sm:$0xff]
    %v78 = vld [vmem:[#allocation5 + $0x28] sm:$0xff]
    %v79 = vld [vmem:[#allocation5 + $0x30] sm:$0xff]
    %v80 = vld [vmem:[#allocation5 + $0x38] sm:$0xff]
    %v81 = vld [vmem:[#allocation7] sm:$0xff]
    %v82 = vld [vmem:[#allocation7 + $0x8] sm:$0xff]
    %v83 = vld [vmem:[#allocation7 + $0x10] sm:$0xff]
    %v84 = vld [vmem:[#allocation7 + $0x18] sm:$0xff]
    %v85 = vld [vmem:[#allocation7 + $0x20] sm:$0xff]
    %v86 = vld [vmem:[#allocation7 + $0x28] sm:$0xff]
    %v87 = vld [vmem:[#allocation7 + $0x30] sm:$0xff]
    %v88 = vld [vmem:[#allocation7 + $0x38] sm:$0xff]
    %vm89 = vcmask 261120
    %v91 = vsel %vm89, %v65, 0
    %v94 = vsel %vm89, %v73, 0
    %96 = vmatpush.xpose.msra.mxu0 0.0
    %97 = vmatpush.xpose.msra.mxu0 0.0
    %98 = vmatpush.xpose.msra.mxu0 0.0
    %99 = vmatpush.xpose.msra.mxu0 0.0
    %100 = vmatpush.xpose.msra.mxu0 0.0
    %101 = vmatpush.xpose.msra.mxu0 0.0
    %102 = vmatpush.xpose.msra.mxu0 0.0
    %103 = vmatpush.xpose.msra.mxu0 0.0
    %104 = vmatpush.xpose.msra.mxu0 0.0
    %105 = vmatpush.xpose.msra.mxu0 0.0
    %106 = vmatpush.xpose.msra.mxu0 0.0
    %107 = vmatpush.xpose.msra.mxu0 0.0
    %108 = vmatpush.xpose.msra.mxu0 0.0
    %109 = vmatpush.xpose.msra.mxu0 0.0
    %110 = vmatpush.xpose.msra.mxu0 0.0
    %111 = vmatpush.xpose.msra.mxu0 %v94
    %112 = vmatmul.f32.gmra.mxu0 %v91
    %v113 = vpop.f32.mrf.mxu0
    %v114 = vadd.f32 0.0, %v113
    %115 = vdwg.mxu0
    %v117 = vsel %vm89, %v66, 0
    %v120 = vsel %vm89, %v74, 0
    %122 = vmatpush.xpose.msra.mxu0 0.0
    %123 = vmatpush.xpose.msra.mxu0 0.0
    %124 = vmatpush.xpose.msra.mxu0 0.0
    %125 = vmatpush.xpose.msra.mxu0 0.0
    %126 = vmatpush.xpose.msra.mxu0 0.0
    %127 = vmatpush.xpose.msra.mxu0 0.0
    %128 = vmatpush.xpose.msra.mxu0 0.0
    %129 = vmatpush.xpose.msra.mxu0 0.0
    %130 = vmatpush.xpose.msra.mxu0 0.0
    %131 = vmatpush.xpose.msra.mxu0 0.0
    %132 = vmatpush.xpose.msra.mxu0 0.0
    %133 = vmatpush.xpose.msra.mxu0 0.0
    %134 = vmatpush.xpose.msra.mxu0 0.0
    %135 = vmatpush.xpose.msra.mxu0 0.0
    %136 = vmatpush.xpose.msra.mxu0 0.0
    %137 = vmatpush.xpose.msra.mxu0 %v120
    %138 = vmatmul.f32.gmra.mxu0 %v117
    %v139 = vpop.f32.mrf.mxu0
    %v140 = vadd.f32 0.0, %v139
    %141 = vdwg.mxu0
    %v143 = vsel %vm89, %v67, 0
    %v146 = vsel %vm89, %v75, 0
    %148 = vmatpush.xpose.msra.mxu0 0.0
    %149 = vmatpush.xpose.msra.mxu0 0.0
    %150 = vmatpush.xpose.msra.mxu0 0.0
    %151 = vmatpush.xpose.msra.mxu0 0.0
    %152 = vmatpush.xpose.msra.mxu0 0.0
    %153 = vmatpush.xpose.msra.mxu0 0.0
    %154 = vmatpush.xpose.msra.mxu0 0.0
    %155 = vmatpush.xpose.msra.mxu0 0.0
    %156 = vmatpush.xpose.msra.mxu0 0.0
    %157 = vmatpush.xpose.msra.mxu0 0.0
    %158 = vmatpush.xpose.msra.mxu0 0.0
    %159 = vmatpush.xpose.msra.mxu0 0.0
    %160 = vmatpush.xpose.msra.mxu0 0.0
    %161 = vmatpush.xpose.msra.mxu0 0.0
    %162 = vmatpush.xpose.msra.mxu0 0.0
    %163 = vmatpush.xpose.msra.mxu0 %v146
    %164 = vmatmul.f32.gmra.mxu0 %v143
    %v165 = vpop.f32.mrf.mxu0
    %v166 = vadd.f32 0.0, %v165
    %167 = vdwg.mxu0
    %v169 = vsel %vm89, %v68, 0
    %v172 = vsel %vm89, %v76, 0
    %174 = vmatpush.xpose.msra.mxu0 0.0
    %175 = vmatpush.xpose.msra.mxu0 0.0
    %176 = vmatpush.xpose.msra.mxu0 0.0
    %177 = vmatpush.xpose.msra.mxu0 0.0
    %178 = vmatpush.xpose.msra.mxu0 0.0
    %179 = vmatpush.xpose.msra.mxu0 0.0
    %180 = vmatpush.xpose.msra.mxu0 0.0
    %181 = vmatpush.xpose.msra.mxu0 0.0
    %182 = vmatpush.xpose.msra.mxu0 0.0
    %183 = vmatpush.xpose.msra.mxu0 0.0
    %184 = vmatpush.xpose.msra.mxu0 0.0
    %185 = vmatpush.xpose.msra.mxu0 0.0
    %186 = vmatpush.xpose.msra.mxu0 0.0
    %187 = vmatpush.xpose.msra.mxu0 0.0
    %188 = vmatpush.xpose.msra.mxu0 0.0
    %189 = vmatpush.xpose.msra.mxu0 %v172
    %190 = vmatmul.f32.gmra.mxu0 %v169
    %v191 = vpop.f32.mrf.mxu0
    %v192 = vadd.f32 0.0, %v191
    %193 = vdwg.mxu0
    %v195 = vsel %vm89, %v69, 0
    %v198 = vsel %vm89, %v77, 0
    %200 = vmatpush.xpose.msra.mxu0 0.0
    %201 = vmatpush.xpose.msra.mxu0 0.0
    %202 = vmatpush.xpose.msra.mxu0 0.0
    %203 = vmatpush.xpose.msra.mxu0 0.0
    %204 = vmatpush.xpose.msra.mxu0 0.0
    %205 = vmatpush.xpose.msra.mxu0 0.0
    %206 = vmatpush.xpose.msra.mxu0 0.0
    %207 = vmatpush.xpose.msra.mxu0 0.0
    %208 = vmatpush.xpose.msra.mxu0 0.0
    %209 = vmatpush.xpose.msra.mxu0 0.0
    %210 = vmatpush.xpose.msra.mxu0 0.0
    %211 = vmatpush.xpose.msra.mxu0 0.0
    %212 = vmatpush.xpose.msra.mxu0 0.0
    %213 = vmatpush.xpose.msra.mxu0 0.0
    %214 = vmatpush.xpose.msra.mxu0 0.0
    %215 = vmatpush.xpose.msra.mxu0 %v198
    %216 = vmatmul.f32.gmra.mxu0 %v195
    %v217 = vpop.f32.mrf.mxu0
    %v218 = vadd.f32 0.0, %v217
    %219 = vdwg.mxu0
    %v221 = vsel %vm89, %v70, 0
    %v224 = vsel %vm89, %v78, 0
    %226 = vmatpush.xpose.msra.mxu0 0.0
    %227 = vmatpush.xpose.msra.mxu0 0.0
    %228 = vmatpush.xpose.msra.mxu0 0.0
    %229 = vmatpush.xpose.msra.mxu0 0.0
    %230 = vmatpush.xpose.msra.mxu0 0.0
    %231 = vmatpush.xpose.msra.mxu0 0.0
    %232 = vmatpush.xpose.msra.mxu0 0.0
    %233 = vmatpush.xpose.msra.mxu0 0.0
    %234 = vmatpush.xpose.msra.mxu0 0.0
    %235 = vmatpush.xpose.msra.mxu0 0.0
    %236 = vmatpush.xpose.msra.mxu0 0.0
    %237 = vmatpush.xpose.msra.mxu0 0.0
    %238 = vmatpush.xpose.msra.mxu0 0.0
    %239 = vmatpush.xpose.msra.mxu0 0.0
    %240 = vmatpush.xpose.msra.mxu0 0.0
    %241 = vmatpush.xpose.msra.mxu0 %v224
    %242 = vmatmul.f32.gmra.mxu0 %v221
    %v243 = vpop.f32.mrf.mxu0
    %v244 = vadd.f32 0.0, %v243
    %245 = vdwg.mxu0
    %v247 = vsel %vm89, %v71, 0
    %v250 = vsel %vm89, %v79, 0
    %252 = vmatpush.xpose.msra.mxu0 0.0
    %253 = vmatpush.xpose.msra.mxu0 0.0
    %254 = vmatpush.xpose.msra.mxu0 0.0
    %255 = vmatpush.xpose.msra.mxu0 0.0
    %256 = vmatpush.xpose.msra.mxu0 0.0
    %257 = vmatpush.xpose.msra.mxu0 0.0
    %258 = vmatpush.xpose.msra.mxu0 0.0
    %259 = vmatpush.xpose.msra.mxu0 0.0
    %260 = vmatpush.xpose.msra.mxu0 0.0
    %261 = vmatpush.xpose.msra.mxu0 0.0
    %262 = vmatpush.xpose.msra.mxu0 0.0
    %263 = vmatpush.xpose.msra.mxu0 0.0
    %264 = vmatpush.xpose.msra.mxu0 0.0
    %265 = vmatpush.xpose.msra.mxu0 0.0
    %266 = vmatpush.xpose.msra.mxu0 0.0
    %267 = vmatpush.xpose.msra.mxu0 %v250
    %268 = vmatmul.f32.gmra.mxu0 %v247
    %v269 = vpop.f32.mrf.mxu0
    %v270 = vadd.f32 0.0, %v269
    %271 = vdwg.mxu0
    %v273 = vsel %vm89, %v72, 0
    %v276 = vsel %vm89, %v80, 0
    %278 = vmatpush.xpose.msra.mxu0 0.0
    %279 = vmatpush.xpose.msra.mxu0 0.0
    %280 = vmatpush.xpose.msra.mxu0 0.0
    %281 = vmatpush.xpose.msra.mxu0 0.0
    %282 = vmatpush.xpose.msra.mxu0 0.0
    %283 = vmatpush.xpose.msra.mxu0 0.0
    %284 = vmatpush.xpose.msra.mxu0 0.0
    %285 = vmatpush.xpose.msra.mxu0 0.0
    %286 = vmatpush.xpose.msra.mxu0 0.0
    %287 = vmatpush.xpose.msra.mxu0 0.0
    %288 = vmatpush.xpose.msra.mxu0 0.0
    %289 = vmatpush.xpose.msra.mxu0 0.0
    %290 = vmatpush.xpose.msra.mxu0 0.0
    %291 = vmatpush.xpose.msra.mxu0 0.0
    %292 = vmatpush.xpose.msra.mxu0 0.0
    %293 = vmatpush.xpose.msra.mxu0 %v276
    %294 = vmatmul.f32.gmra.mxu0 %v273
    %v295 = vpop.f32.mrf.mxu0
    %v296 = vadd.f32 0.0, %v295
    %297 = vdwg.mxu0
    %v298 = vmul.f32 %v114, 0.17677669
    %v299 = vmul.f32 %v140, 0.17677669
    %v300 = vmul.f32 %v166, 0.17677669
    %v301 = vmul.f32 %v192, 0.17677669
    %v302 = vmul.f32 %v218, 0.17677669
    %v303 = vmul.f32 %v244, 0.17677669
    %v304 = vmul.f32 %v270, 0.17677669
    %v305 = vmul.f32 %v296, 0.17677669
    %vm306 = vcmask 64512
    %v307 = vsel %vm306, %v298, -inf
    %308 = vmax.xlane.f32.xlu0 %v307
    %v309 = vpop.xlane.xlu0 %308
    %v310 = vsel %vm306, %v299, -inf
    %311 = vmax.xlane.f32.xlu0 %v310
    %v312 = vpop.xlane.xlu0 %311
    %v313 = vsel %vm306, %v300, -inf
    %314 = vmax.xlane.f32.xlu0 %v313
    %v315 = vpop.xlane.xlu0 %314
    %v316 = vsel %vm306, %v301, -inf
    %317 = vmax.xlane.f32.xlu0 %v316
    %v318 = vpop.xlane.xlu0 %317
    %v319 = vsel %vm306, %v302, -inf
    %320 = vmax.xlane.f32.xlu0 %v319
    %v321 = vpop.xlane.xlu0 %320
    %v322 = vsel %vm306, %v303, -inf
    %323 = vmax.xlane.f32.xlu0 %v322
    %v324 = vpop.xlane.xlu0 %323
    %v325 = vsel %vm306, %v304, -inf
    %326 = vmax.xlane.f32.xlu0 %v325
    %v327 = vpop.xlane.xlu0 %326
    %v328 = vsel %vm306, %v305, -inf
    %329 = vmax.xlane.f32.xlu0 %v328
    %v330 = vpop.xlane.xlu0 %329
    %v331 = vsub.f32 %v298, %v309
    %v332 = vsub.f32 %v299, %v312
    %v333 = vsub.f32 %v300, %v315
    %v334 = vsub.f32 %v301, %v318
    %v335 = vsub.f32 %v302, %v321
    %v336 = vsub.f32 %v303, %v324
    %v337 = vsub.f32 %v304, %v327
    %v338 = vsub.f32 %v305, %v330
    %v339 = vmul.f32 %v331, 1.442695
    %v340 = vpow.pop %v339
    %v341 = vmul.f32 %v332, 1.442695
    %v342 = vpow.pop %v341
    %v343 = vmul.f32 %v333, 1.442695
    %v344 = vpow.pop %v343
    %v345 = vmul.f32 %v334, 1.442695
    %v346 = vpow.pop %v345
    %v347 = vmul.f32 %v335, 1.442695
    %v348 = vpow.pop %v347
    %v349 = vmul.f32 %v336, 1.442695
    %v350 = vpow.pop %v349
    %v351 = vmul.f32 %v337, 1.442695
    %v352 = vpow.pop %v351
    %v353 = vmul.f32 %v338, 1.442695
    %v354 = vpow.pop %v353
    %v355 = vsel %vm306, %v340, 0.0
    %356 = vadd.xlane.f32.xlu0 %v355
    %v357 = vpop.xlane.xlu0 %356
    %v358 = vsel %vm306, %v342, 0.0
    %359 = vadd.xlane.f32.xlu0 %v358
    %v360 = vpop.xlane.xlu0 %359
    %v361 = vsel %vm306, %v344, 0.0
    %362 = vadd.xlane.f32.xlu0 %v361
    %v363 = vpop.xlane.xlu0 %362
    %v364 = vsel %vm306, %v346, 0.0
    %365 = vadd.xlane.f32.xlu0 %v364
    %v366 = vpop.xlane.xlu0 %365
    %v367 = vsel %vm306, %v348, 0.0
    %368 = vadd.xlane.f32.xlu0 %v367
    %v369 = vpop.xlane.xlu0 %368
    %v370 = vsel %vm306, %v350, 0.0
    %371 = vadd.xlane.f32.xlu0 %v370
    %v372 = vpop.xlane.xlu0 %371
    %v373 = vsel %vm306, %v352, 0.0
    %374 = vadd.xlane.f32.xlu0 %v373
    %v375 = vpop.xlane.xlu0 %374
    %v376 = vsel %vm306, %v354, 0.0
    %377 = vadd.xlane.f32.xlu0 %v376
    %v378 = vpop.xlane.xlu0 %377
    %v379 = vrcp.pop %v357
    %v380 = vmul.f32 %v357, %v379
    %v381 = vsub.f32 1.0, %v380
    %v382 = vmul.f32 %v379, %v381
    %v383 = vadd.f32 %v379, %v382
    %vm384 = vweird.f32 %v357
    %vm385 = vweird.f32 %v379
    %vm386 = vmor %vm384, %vm385
    %v387 = vsel %vm386, %v379, %v383
    %v388 = vand.u32 2147483647, %v357
    %vm389 = vcmp.eq.f32.partialorder %v388, 8.507059e+37
    %v390 = vand.u32 %v357, 2147483648
    %v391 = vor.u32 1.1754944e-38, %v390
    %v392 = vsel %vm389, %v391, %v387
    %v393 = vrcp.pop %v360
    %v394 = vmul.f32 %v360, %v393
    %v395 = vsub.f32 1.0, %v394
    %v396 = vmul.f32 %v393, %v395
    %v397 = vadd.f32 %v393, %v396
    %vm398 = vweird.f32 %v360
    %vm399 = vweird.f32 %v393
    %vm400 = vmor %vm398, %vm399
    %v401 = vsel %vm400, %v393, %v397
    %v402 = vand.u32 2147483647, %v360
    %vm403 = vcmp.eq.f32.partialorder %v402, 8.507059e+37
    %v404 = vand.u32 %v360, 2147483648
    %v405 = vor.u32 1.1754944e-38, %v404
    %v406 = vsel %vm403, %v405, %v401
    %v407 = vrcp.pop %v363
    %v408 = vmul.f32 %v363, %v407
    %v409 = vsub.f32 1.0, %v408
    %v410 = vmul.f32 %v407, %v409
    %v411 = vadd.f32 %v407, %v410
    %vm412 = vweird.f32 %v363
    %vm413 = vweird.f32 %v407
    %vm414 = vmor %vm412, %vm413
    %v415 = vsel %vm414, %v407, %v411
    %v416 = vand.u32 2147483647, %v363
    %vm417 = vcmp.eq.f32.partialorder %v416, 8.507059e+37
    %v418 = vand.u32 %v363, 2147483648
    %v419 = vor.u32 1.1754944e-38, %v418
    %v420 = vsel %vm417, %v419, %v415
    %v421 = vrcp.pop %v366
    %v422 = vmul.f32 %v366, %v421
    %v423 = vsub.f32 1.0, %v422
    %v424 = vmul.f32 %v421, %v423
    %v425 = vadd.f32 %v421, %v424
    %vm426 = vweird.f32 %v366
    %vm427 = vweird.f32 %v421
    %vm428 = vmor %vm426, %vm427
    %v429 = vsel %vm428, %v421, %v425
    %v430 = vand.u32 2147483647, %v366
    %vm431 = vcmp.eq.f32.partialorder %v430, 8.507059e+37
    %v432 = vand.u32 %v366, 2147483648
    %v433 = vor.u32 1.1754944e-38, %v432
    %v434 = vsel %vm431, %v433, %v429
    %v435 = vrcp.pop %v369
    %v436 = vmul.f32 %v369, %v435
    %v437 = vsub.f32 1.0, %v436
    %v438 = vmul.f32 %v435, %v437
    %v439 = vadd.f32 %v435, %v438
    %vm440 = vweird.f32 %v369
    %vm441 = vweird.f32 %v435
    %vm442 = vmor %vm440, %vm441
    %v443 = vsel %vm442, %v435, %v439
    %v444 = vand.u32 2147483647, %v369
    %vm445 = vcmp.eq.f32.partialorder %v444, 8.507059e+37
    %v446 = vand.u32 %v369, 2147483648
    %v447 = vor.u32 1.1754944e-38, %v446
    %v448 = vsel %vm445, %v447, %v443
    %v449 = vrcp.pop %v372
    %v450 = vmul.f32 %v372, %v449
    %v451 = vsub.f32 1.0, %v450
    %v452 = vmul.f32 %v449, %v451
    %v453 = vadd.f32 %v449, %v452
    %vm454 = vweird.f32 %v372
    %vm455 = vweird.f32 %v449
    %vm456 = vmor %vm454, %vm455
    %v457 = vsel %vm456, %v449, %v453
    %v458 = vand.u32 2147483647, %v372
    %vm459 = vcmp.eq.f32.partialorder %v458, 8.507059e+37
    %v460 = vand.u32 %v372, 2147483648
    %v461 = vor.u32 1.1754944e-38, %v460
    %v462 = vsel %vm459, %v461, %v457
    %v463 = vrcp.pop %v375
    %v464 = vmul.f32 %v375, %v463
    %v465 = vsub.f32 1.0, %v464
    %v466 = vmul.f32 %v463, %v465
    %v467 = vadd.f32 %v463, %v466
    %vm468 = vweird.f32 %v375
    %vm469 = vweird.f32 %v463
    %vm470 = vmor %vm468, %vm469
    %v471 = vsel %vm470, %v463, %v467
    %v472 = vand.u32 2147483647, %v375
    %vm473 = vcmp.eq.f32.partialorder %v472, 8.507059e+37
    %v474 = vand.u32 %v375, 2147483648
    %v475 = vor.u32 1.1754944e-38, %v474
    %v476 = vsel %vm473, %v475, %v471
    %v477 = vrcp.pop %v378
    %v478 = vmul.f32 %v378, %v477
    %v479 = vsub.f32 1.0, %v478
    %v480 = vmul.f32 %v477, %v479
    %v481 = vadd.f32 %v477, %v480
    %vm482 = vweird.f32 %v378
    %vm483 = vweird.f32 %v477
    %vm484 = vmor %vm482, %vm483
    %v485 = vsel %vm484, %v477, %v481
    %v486 = vand.u32 2147483647, %v378
    %vm487 = vcmp.eq.f32.partialorder %v486, 8.507059e+37
    %v488 = vand.u32 %v378, 2147483648
    %v489 = vor.u32 1.1754944e-38, %v488
    %v490 = vsel %vm487, %v489, %v485
    %v491 = vmul.f32 %v340, %v392
    %v492 = vmul.f32 %v342, %v406
    %v493 = vmul.f32 %v344, %v420
    %v494 = vmul.f32 %v346, %v434
    %v495 = vmul.f32 %v348, %v448
    %v496 = vmul.f32 %v350, %v462
    %v497 = vmul.f32 %v352, %v476
    %v498 = vmul.f32 %v354, %v490
    %499 = vst.msk [vmem:[#allocation9] sm:$0xff] %vm306, %v491
    %500 = vst.msk [vmem:[#allocation9 + $0x8] sm:$0xff] %vm306, %v492
    %501 = vst.msk [vmem:[#allocation9 + $0x10] sm:$0xff] %vm306, %v493
    %502 = vst.msk [vmem:[#allocation9 + $0x18] sm:$0xff] %vm306, %v494
    %503 = vst.msk [vmem:[#allocation9 + $0x20] sm:$0xff] %vm306, %v495
    %504 = vst.msk [vmem:[#allocation9 + $0x28] sm:$0xff] %vm306, %v496
    %505 = vst.msk [vmem:[#allocation9 + $0x30] sm:$0xff] %vm306, %v497
    %506 = vst.msk [vmem:[#allocation9 + $0x38] sm:$0xff] %vm306, %v498
    %v508 = vsel %vm306, %v491, 0
    %510 = vmatpush.msra.mxu0 0.0
    %511 = vmatpush.msra.mxu0 0.0
    %512 = vmatpush.msra.mxu0 0.0
    %513 = vmatpush.msra.mxu0 0.0
    %514 = vmatpush.msra.mxu0 0.0
    %515 = vmatpush.msra.mxu0 0.0
    %516 = vmatpush.msra.mxu0 0.0
    %517 = vmatpush.msra.mxu0 0.0
    %518 = vmatpush.msra.mxu0 0.0
    %519 = vmatpush.msra.mxu0 0.0
    %520 = vmatpush.msra.mxu0 0.0
    %521 = vmatpush.msra.mxu0 0.0
    %522 = vmatpush.msra.mxu0 0.0
    %523 = vmatpush.msra.mxu0 0.0
    %524 = vmatpush.msra.mxu0 0.0
    %525 = vmatpush.msra.mxu0 %v81
    %526 = vmatmul.f32.gmra.mxu0 %v508
    %v527 = vpop.f32.mrf.mxu0
    %v528 = vadd.f32 0.0, %v527
    %529 = vdwg.mxu0
    %v531 = vsel %vm306, %v492, 0
    %533 = vmatpush.msra.mxu0 0.0
    %534 = vmatpush.msra.mxu0 0.0
    %535 = vmatpush.msra.mxu0 0.0
    %536 = vmatpush.msra.mxu0 0.0
    %537 = vmatpush.msra.mxu0 0.0
    %538 = vmatpush.msra.mxu0 0.0
    %539 = vmatpush.msra.mxu0 0.0
    %540 = vmatpush.msra.mxu0 0.0
    %541 = vmatpush.msra.mxu0 0.0
    %542 = vmatpush.msra.mxu0 0.0
    %543 = vmatpush.msra.mxu0 0.0
    %544 = vmatpush.msra.mxu0 0.0
    %545 = vmatpush.msra.mxu0 0.0
    %546 = vmatpush.msra.mxu0 0.0
    %547 = vmatpush.msra.mxu0 0.0
    %548 = vmatpush.msra.mxu0 %v82
    %549 = vmatmul.f32.gmra.mxu0 %v531
    %v550 = vpop.f32.mrf.mxu0
    %v551 = vadd.f32 0.0, %v550
    %552 = vdwg.mxu0
    %v554 = vsel %vm306, %v493, 0
    %556 = vmatpush.msra.mxu0 0.0
    %557 = vmatpush.msra.mxu0 0.0
    %558 = vmatpush.msra.mxu0 0.0
    %559 = vmatpush.msra.mxu0 0.0
    %560 = vmatpush.msra.mxu0 0.0
    %561 = vmatpush.msra.mxu0 0.0
    %562 = vmatpush.msra.mxu0 0.0
    %563 = vmatpush.msra.mxu0 0.0
    %564 = vmatpush.msra.mxu0 0.0
    %565 = vmatpush.msra.mxu0 0.0
    %566 = vmatpush.msra.mxu0 0.0
    %567 = vmatpush.msra.mxu0 0.0
    %568 = vmatpush.msra.mxu0 0.0
    %569 = vmatpush.msra.mxu0 0.0
    %570 = vmatpush.msra.mxu0 0.0
    %571 = vmatpush.msra.mxu0 %v83
    %572 = vmatmul.f32.gmra.mxu0 %v554
    %v573 = vpop.f32.mrf.mxu0
    %v574 = vadd.f32 0.0, %v573
    %575 = vdwg.mxu0
    %v577 = vsel %vm306, %v494, 0
    %579 = vmatpush.msra.mxu0 0.0
    %580 = vmatpush.msra.mxu0 0.0
    %581 = vmatpush.msra.mxu0 0.0
    %582 = vmatpush.msra.mxu0 0.0
    %583 = vmatpush.msra.mxu0 0.0
    %584 = vmatpush.msra.mxu0 0.0
    %585 = vmatpush.msra.mxu0 0.0
    %586 = vmatpush.msra.mxu0 0.0
    %587 = vmatpush.msra.mxu0 0.0
    %588 = vmatpush.msra.mxu0 0.0
    %589 = vmatpush.msra.mxu0 0.0
    %590 = vmatpush.msra.mxu0 0.0
    %591 = vmatpush.msra.mxu0 0.0
    %592 = vmatpush.msra.mxu0 0.0
    %593 = vmatpush.msra.mxu0 0.0
    %594 = vmatpush.msra.mxu0 %v84
    %595 = vmatmul.f32.gmra.mxu0 %v577
    %v596 = vpop.f32.mrf.mxu0
    %v597 = vadd.f32 0.0, %v596
    %598 = vdwg.mxu0
    %v600 = vsel %vm306, %v495, 0
    %602 = vmatpush.msra.mxu0 0.0
    %603 = vmatpush.msra.mxu0 0.0
    %604 = vmatpush.msra.mxu0 0.0
    %605 = vmatpush.msra.mxu0 0.0
    %606 = vmatpush.msra.mxu0 0.0
    %607 = vmatpush.msra.mxu0 0.0
    %608 = vmatpush.msra.mxu0 0.0
    %609 = vmatpush.msra.mxu0 0.0
    %610 = vmatpush.msra.mxu0 0.0
    %611 = vmatpush.msra.mxu0 0.0
    %612 = vmatpush.msra.mxu0 0.0
    %613 = vmatpush.msra.mxu0 0.0
    %614 = vmatpush.msra.mxu0 0.0
    %615 = vmatpush.msra.mxu0 0.0
    %616 = vmatpush.msra.mxu0 0.0
    %617 = vmatpush.msra.mxu0 %v85
    %618 = vmatmul.f32.gmra.mxu0 %v600
    %v619 = vpop.f32.mrf.mxu0
    %v620 = vadd.f32 0.0, %v619
    %621 = vdwg.mxu0
    %v623 = vsel %vm306, %v496, 0
    %625 = vmatpush.msra.mxu0 0.0
    %626 = vmatpush.msra.mxu0 0.0
    %627 = vmatpush.msra.mxu0 0.0
    %628 = vmatpush.msra.mxu0 0.0
    %629 = vmatpush.msra.mxu0 0.0
    %630 = vmatpush.msra.mxu0 0.0
    %631 = vmatpush.msra.mxu0 0.0
    %632 = vmatpush.msra.mxu0 0.0
    %633 = vmatpush.msra.mxu0 0.0
    %634 = vmatpush.msra.mxu0 0.0
    %635 = vmatpush.msra.mxu0 0.0
    %636 = vmatpush.msra.mxu0 0.0
    %637 = vmatpush.msra.mxu0 0.0
    %638 = vmatpush.msra.mxu0 0.0
    %639 = vmatpush.msra.mxu0 0.0
    %640 = vmatpush.msra.mxu0 %v86
    %641 = vmatmul.f32.gmra.mxu0 %v623
    %v642 = vpop.f32.mrf.mxu0
    %v643 = vadd.f32 0.0, %v642
    %644 = vdwg.mxu0
    %v646 = vsel %vm306, %v497, 0
    %648 = vmatpush.msra.mxu0 0.0
    %649 = vmatpush.msra.mxu0 0.0
    %650 = vmatpush.msra.mxu0 0.0
    %651 = vmatpush.msra.mxu0 0.0
    %652 = vmatpush.msra.mxu0 0.0
    %653 = vmatpush.msra.mxu0 0.0
    %654 = vmatpush.msra.mxu0 0.0
    %655 = vmatpush.msra.mxu0 0.0
    %656 = vmatpush.msra.mxu0 0.0
    %657 = vmatpush.msra.mxu0 0.0
    %658 = vmatpush.msra.mxu0 0.0
    %659 = vmatpush.msra.mxu0 0.0
    %660 = vmatpush.msra.mxu0 0.0
    %661 = vmatpush.msra.mxu0 0.0
    %662 = vmatpush.msra.mxu0 0.0
    %663 = vmatpush.msra.mxu0 %v87
    %664 = vmatmul.f32.gmra.mxu0 %v646
    %v665 = vpop.f32.mrf.mxu0
    %v666 = vadd.f32 0.0, %v665
    %667 = vdwg.mxu0
    %v669 = vsel %vm306, %v498, 0
    %671 = vmatpush.msra.mxu0 0.0
    %672 = vmatpush.msra.mxu0 0.0
    %673 = vmatpush.msra.mxu0 0.0
    %674 = vmatpush.msra.mxu0 0.0
    %675 = vmatpush.msra.mxu0 0.0
    %676 = vmatpush.msra.mxu0 0.0
    %677 = vmatpush.msra.mxu0 0.0
    %678 = vmatpush.msra.mxu0 0.0
    %679 = vmatpush.msra.mxu0 0.0
    %680 = vmatpush.msra.mxu0 0.0
    %681 = vmatpush.msra.mxu0 0.0
    %682 = vmatpush.msra.mxu0 0.0
    %683 = vmatpush.msra.mxu0 0.0
    %684 = vmatpush.msra.mxu0 0.0
    %685 = vmatpush.msra.mxu0 0.0
    %686 = vmatpush.msra.mxu0 %v88
    %687 = vmatmul.f32.gmra.mxu0 %v669
    %v688 = vpop.f32.mrf.mxu0
    %v689 = vadd.f32 0.0, %v688
    %690 = vdwg.mxu0
    %691 = vst.msk [vmem:[#allocation8] sm:$0xff] %vm89, %v528
    %692 = vst.msk [vmem:[#allocation8 + $0x8] sm:$0xff] %vm89, %v551
    %693 = vst.msk [vmem:[#allocation8 + $0x10] sm:$0xff] %vm89, %v574
    %694 = vst.msk [vmem:[#allocation8 + $0x18] sm:$0xff] %vm89, %v597
    %695 = vst.msk [vmem:[#allocation8 + $0x20] sm:$0xff] %vm89, %v620
    %696 = vst.msk [vmem:[#allocation8 + $0x28] sm:$0xff] %vm89, %v643
    %697 = vst.msk [vmem:[#allocation8 + $0x30] sm:$0xff] %vm89, %v666
    %698 = vst.msk [vmem:[#allocation8 + $0x38] sm:$0xff] %vm89, %v689
    // Predicated region
    $region26: #{tpu_custom_call.1} parent=1 // pred_check
      _
    $region27: #{tpu_custom_call.1} parent=1 // pred_check_branch
      %700 = sbr.rel (0) target = $region29
    $region28: #{tpu_custom_call.1} parent=1 // pred_region
      %702 = vsyncadd [#allocation4], 0
      %s703 = sshll.u32 [#allocation8], 4
      %s704 = int_to_ptr.vmem [resolvable:$true] %s703
      %s705 = sshll.u32 %s3, 4
      %s706 = int_to_ptr.hbm [resolvable:$true] %s705
      %711 = dma.vmem_to_hbm [thread:$0]  %s704, 1024, %s706, [#allocation4], 128, 128, 8
    $region29: #{tpu_custom_call.1} parent=1 // pred_fallthru
      _
    // Predicated region
    $region30: #{tpu_custom_call.1} parent=1 // pred_check
      _
    $region31: #{tpu_custom_call.1} parent=1 // pred_check_branch
      %713 = sbr.rel (0) target = $region33
    $region32: #{tpu_custom_call.1} parent=1 // pred_region
      %715 = vsyncadd [#allocation10], 0
      %s716 = sshll.u32 [#allocation9], 4
      %s717 = int_to_ptr.vmem [resolvable:$true] %s716
      %s718 = sshll.u32 %s4, 4
      %s719 = int_to_ptr.hbm [resolvable:$true] %s718
      %724 = dma.vmem_to_hbm [thread:$0]  %s717, 1024, %s719, [#allocation10], 128, 128, 8
    $region33: #{tpu_custom_call.1} parent=1 // pred_fallthru
      _
    // Predicated region
    $region34: #{tpu_custom_call.1} parent=1 // pred_check
      _
    $region35: #{tpu_custom_call.1} parent=1 // pred_check_branch
      %726 = sbr.rel (0) target = $region37
    $region36: #{tpu_custom_call.1} parent=1 // pred_region
      %728 = dma.done [#allocation4], 1024
    $region37: #{tpu_custom_call.1} parent=1 // pred_fallthru
      _
    // Predicated region
    $region38: #{tpu_custom_call.1} parent=1 // pred_check
      _
    $region39: #{tpu_custom_call.1} parent=1 // pred_check_branch
      %730 = sbr.rel (0) target = $region41
    $region40: #{tpu_custom_call.1} parent=1 // pred_region
      %732 = dma.done [#allocation10], 1024
    $region41: #{tpu_custom_call.1} parent=1 // pred_fallthru
      _
    %733 = vsyncpa [#allocation3], 1
    %734 = vsyncpa [#allocation6], 1
    %735 = vsyncpa [#allocation4], 1
    %736 = vsyncpa [#allocation10], 1

</llo_original>
